<compile_context>
chip_gen: v7x
topology: tpu7x:2x2x1
jax: 0.10.0
libtpu: 0.0.40
codegen_flags: <defaults>
</compile_context>

<pallas_src>
import functools

import jax
import jax.numpy as jnp
from jax.experimental import pallas as pl
from jax.experimental.pallas import tpu as pltpu

LANE = 128    # vreg lane width
SUBLANE = 8   # f32 sublane count


def _round_up(x, m):
    return (x + m - 1) // m * m


def _actor_kernel(x_ref, w1_ref, b1_ref, w2_ref, b2_ref, w3_ref, b3_ref, o_ref):
    # Layer 1 + relu: f32 matmul over the true (small) input_size; rhs is one
    # native (in_size, 128) f32 tile.  Bias/relu on the VPU in f32.
    x = x_ref[...]
    h1 = jnp.dot(x, w1_ref[...], preferred_element_type=jnp.float32) + b1_ref[...]
    h1 = jnp.maximum(h1, 0.0)

    # Layer 2 + relu: bf16 operands into the MXU, f32 accumulate, f32 epilogue.
    h2 = jnp.dot(h1.astype(jnp.bfloat16), w2_ref[...],
                 preferred_element_type=jnp.float32) + b2_ref[...]
    h2 = jnp.maximum(h2, 0.0)

    # Layer 3 + tanh: bf16 matmul, f32 accumulate; tanh on the EUP in f32;
    # lane-dense 128-wide store.
    h3 = jnp.dot(h2.astype(jnp.bfloat16), w3_ref[...],
                 preferred_element_type=jnp.float32) + b3_ref[...]
    o_ref[...] = jnp.tanh(h3).astype(o_ref.dtype)


def init_actor_params(key, input_size, hidden_size, output_size):
    """Mimics torch.nn.Linear default init: U(-1/sqrt(fan_in), 1/sqrt(fan_in)).
    Weights are stored transposed vs. PyTorch ((in_features, out_features)),
    so the kernel computes y = x @ W + b directly."""
    ks = jax.random.split(key, 6)

    def linear(kw, kb, fan_in, fan_out):
        bound = 1.0 / jnp.sqrt(jnp.float32(fan_in))
        w = jax.random.uniform(kw, (fan_in, fan_out), jnp.float32, -bound, bound)
        b = jax.random.uniform(kb, (1, fan_out), jnp.float32, -bound, bound)
        return w, b

    w1, b1 = linear(ks[0], ks[1], input_size, hidden_size)
    w2, b2 = linear(ks[2], ks[3], hidden_size, hidden_size)
    w3, b3 = linear(ks[4], ks[5], hidden_size, output_size)
    return {"w1": w1, "b1": b1, "w2": w2, "b2": b2, "w3": w3, "b3": b3}


def prep_actor_params(params):
    """One-time prep (outside the rollout loop):
      * zero-pad hidden/output feature dims to 128 lanes,
      * keep w1 f32 (contracts over true input_size, rhs is one native tile),
      * cast the two big weights w2/w3 to bf16 (MXU-native, half the DMA/VMEM),
      * keep all biases f32 (epilogue math stays f32 on every TPU gen).
    Zero padding is exact: padded hidden lanes stay 0 through relu and padded
    output lanes stay 0 through tanh."""
    in_size, hid = params["w1"].shape
    out = params["w3"].shape[1]
    hid_p = _round_up(hid, LANE)
    out_p = _round_up(out, LANE)

    def pad2(a, rows, cols, dtype):
        a = jnp.pad(a, ((0, rows - a.shape[0]), (0, cols - a.shape[1])))
        return a.astype(dtype)

    return {
        "w1": pad2(params["w1"], in_size, hid_p, jnp.float32),
        "b1": pad2(params["b1"], 1, hid_p, jnp.float32),
        "w2": pad2(params["w2"], hid_p, hid_p, jnp.bfloat16),
        "b2": pad2(params["b2"], 1, hid_p, jnp.float32),
        "w3": pad2(params["w3"], hid_p, out_p, jnp.bfloat16),
        "b3": pad2(params["b3"], 1, out_p, jnp.float32),
    }


@functools.partial(jax.jit, static_argnames=("output_size",))
def actor_forward(state, prepped_params, *, output_size):
    """state: [B, input_size] f32 (unpadded).  prepped_params: prep_actor_params(...)."""
    pp = prepped_params
    w1, b1, w2, b2, w3, b3 = pp["w1"], pp["b1"], pp["w2"], pp["b2"], pp["w3"], pp["b3"]
    B, in_size = state.shape
    out_p = w3.shape[1]

    # Batch tile: per-grid-step overhead dominates at these sizes, so take one
    # big tile (multiple of 8 sublanes, up to 512 rows).  For larger batches
    # use 256-row tiles so the grid has multiple steps the v7x megacore can
    # shard across its two TensorCores.
    B8 = _round_up(B, SUBLANE)
    TB = B8 if B8 <= 512 else 256
    B_p = _round_up(B8, TB)
    grid = (B_p // TB,)

    def resident(shape):
        # Constant index_map: weights/biases are DMA'd to VMEM once and stay
        # resident across all batch-grid steps.
        return pl.BlockSpec(shape, lambda i: (0, 0))

    out_padded = pl.pallas_call(
        _actor_kernel,
        out_shape=jax.ShapeDtypeStruct((B_p, out_p), jnp.float32),
        grid=grid,
        in_specs=[
            # State tile walks the batch.  Last block dim == full array dim,
            # so the true (unpadded) state is read straight from HBM — no
            # wrapper-side pad, no 16x-inflated extra HBM round trip.  Any
            # out-of-bounds tail rows are row-local and sliced off below.
            pl.BlockSpec((TB, in_size), lambda i: (i, 0)),
            resident(w1.shape), resident(b1.shape),
            resident(w2.shape), resident(b2.shape),
            resident(w3.shape), resident(b3.shape),
        ],
        out_specs=pl.BlockSpec((TB, out_p), lambda i: (i, 0)),
        compiler_params=pltpu.CompilerParams(
            dimension_semantics=("parallel",),   # megacore-shards batch on v7x
        ),
    )(state, w1, b1, w2, b2, w3, b3)

    return out_padded[:B, :output_size]


def _reference_forward(state, p):
    h1 = jnp.maximum(state @ p["w1"] + p["b1"], 0.0)
    h2 = jnp.maximum(h1 @ p["w2"] + p["b2"], 0.0)
    return jnp.tanh(h2 @ p["w3"] + p["b3"])


if __name__ == "__main__":
    input_size, hidden_size, output_size = 8, 32, 4
    batch = 2

    key = jax.random.PRNGKey(0)
    k_params, k_state, k_state_big = jax.random.split(key, 3)

    params = init_actor_params(k_params, input_size, hidden_size, output_size)
    prepped = prep_actor_params(params)   # one-time prep, amortized

    # Small case matching the module's typical DDPG sizes.
    state = jax.random.normal(k_state, (batch, input_size), jnp.float32)
    out = jax.block_until_ready(
        actor_forward(state, prepped, output_size=output_size))
    ref = _reference_forward(state, params)
    assert out.shape == (batch, output_size)
    # bf16 matmul operands (f32 accumulation) vs. the pure-f32 reference.
    assert jnp.allclose(out, ref, atol=2e-2, rtol=2e-2)

    # Larger batch exercising a ragged tail (one 304-row tile, 4 pad rows).
    state_big = jax.random.normal(k_state_big, (300, input_size), jnp.float32)
    out_big = jax.block_until_ready(
        actor_forward(state_big, prepped, output_size=output_size))
    ref_big = _reference_forward(state_big, params)
    assert out_big.shape == (300, output_size)
    assert jnp.allclose(out_big, ref_big, atol=2e-2, rtol=2e-2)

    print("KERNEL_OK")
</pallas_src>

<mosaic_0001>
module attributes {stable_mosaic.version = 11 : i64} {
  func.func @_actor_kernel(%arg0: i32, %arg1: memref<8x8xf32, #tpu.memory_space<vmem>>, %arg2: memref<8x128xf32, #tpu.memory_space<vmem>>, %arg3: memref<1x128xf32, #tpu.memory_space<vmem>>, %arg4: memref<128x128xbf16, #tpu.memory_space<vmem>>, %arg5: memref<1x128xf32, #tpu.memory_space<vmem>>, %arg6: memref<128x128xbf16, #tpu.memory_space<vmem>>, %arg7: memref<1x128xf32, #tpu.memory_space<vmem>>, %arg8: memref<8x128xf32, #tpu.memory_space<vmem>>) attributes {dimension_semantics = [#tpu.dimension_semantics<parallel>], iteration_bounds = array<i64: 1>, scalar_prefetch = 0 : i64, scratch_operands = 0 : i64, tpu.core_type = #tpu.core_type<tc>, window_params = [{transform_indices = @transform_0, window_bounds = array<i64: 8, 8>}, {pipeline_mode = #tpu.pipeline_mode<synchronous>, transform_indices = @transform_1, window_bounds = array<i64: 8, 128>}, {pipeline_mode = #tpu.pipeline_mode<synchronous>, transform_indices = @transform_2, window_bounds = array<i64: 1, 128>}, {pipeline_mode = #tpu.pipeline_mode<synchronous>, transform_indices = @transform_3, window_bounds = array<i64: 128, 128>}, {pipeline_mode = #tpu.pipeline_mode<synchronous>, transform_indices = @transform_4, window_bounds = array<i64: 1, 128>}, {pipeline_mode = #tpu.pipeline_mode<synchronous>, transform_indices = @transform_5, window_bounds = array<i64: 128, 128>}, {pipeline_mode = #tpu.pipeline_mode<synchronous>, transform_indices = @transform_6, window_bounds = array<i64: 1, 128>}, {transform_indices = @transform_7, window_bounds = array<i64: 8, 128>}]} {
    %c0 = arith.constant 0 : index
    %c0_0 = arith.constant 0 : index
    %0 = vector.load %arg1[%c0, %c0_0] : memref<8x8xf32, #tpu.memory_space<vmem>>, vector<8x8xf32>
    %c0_1 = arith.constant 0 : index
    %c0_2 = arith.constant 0 : index
    %1 = vector.load %arg2[%c0_1, %c0_2] : memref<8x128xf32, #tpu.memory_space<vmem>>, vector<8x128xf32>
    %cst = arith.constant dense<0.000000e+00> : vector<8x128xf32>
    %2 = tpu.matmul %0, %1, %cst {dimension_numbers = #tpu.dot_dimension_numbers<[1], [0], [0], [1], [0, 0, 1, 1], [], []>} : vector<8x8xf32>, vector<8x128xf32>, vector<8x128xf32> -> vector<8x128xf32>
    %c0_3 = arith.constant 0 : index
    %c0_4 = arith.constant 0 : index
    %3 = vector.load %arg3[%c0_3, %c0_4] : memref<1x128xf32, #tpu.memory_space<vmem>>, vector<1x128xf32>
    %4 = vector.broadcast %3 : vector<1x128xf32> to vector<8x128xf32>
    %5 = arith.addf %2, %4 : vector<8x128xf32>
    %cst_5 = arith.constant 0.000000e+00 : f32
    %6 = vector.broadcast %cst_5 : f32 to vector<8x128xf32>
    %7 = arith.maximumf %5, %6 : vector<8x128xf32>
    %8 = arith.truncf %7 : vector<8x128xf32> to vector<8x128xbf16>
    %c0_6 = arith.constant 0 : index
    %c0_7 = arith.constant 0 : index
    %9 = vector.load %arg4[%c0_6, %c0_7] : memref<128x128xbf16, #tpu.memory_space<vmem>>, vector<128x128xbf16>
    %cst_8 = arith.constant dense<0.000000e+00> : vector<8x128xf32>
    %10 = tpu.matmul %8, %9, %cst_8 {dimension_numbers = #tpu.dot_dimension_numbers<[1], [0], [0], [1], [0, 0, 1, 1], [], []>} : vector<8x128xbf16>, vector<128x128xbf16>, vector<8x128xf32> -> vector<8x128xf32>
    %c0_9 = arith.constant 0 : index
    %c0_10 = arith.constant 0 : index
    %11 = vector.load %arg5[%c0_9, %c0_10] : memref<1x128xf32, #tpu.memory_space<vmem>>, vector<1x128xf32>
    %12 = vector.broadcast %11 : vector<1x128xf32> to vector<8x128xf32>
    %13 = arith.addf %10, %12 : vector<8x128xf32>
    %cst_11 = arith.constant 0.000000e+00 : f32
    %14 = vector.broadcast %cst_11 : f32 to vector<8x128xf32>
    %15 = arith.maximumf %13, %14 : vector<8x128xf32>
    %16 = arith.truncf %15 : vector<8x128xf32> to vector<8x128xbf16>
    %c0_12 = arith.constant 0 : index
    %c0_13 = arith.constant 0 : index
    %17 = vector.load %arg6[%c0_12, %c0_13] : memref<128x128xbf16, #tpu.memory_space<vmem>>, vector<128x128xbf16>
    %cst_14 = arith.constant dense<0.000000e+00> : vector<8x128xf32>
    %18 = tpu.matmul %16, %17, %cst_14 {dimension_numbers = #tpu.dot_dimension_numbers<[1], [0], [0], [1], [0, 0, 1, 1], [], []>} : vector<8x128xbf16>, vector<128x128xbf16>, vector<8x128xf32> -> vector<8x128xf32>
    %c0_15 = arith.constant 0 : index
    %c0_16 = arith.constant 0 : index
    %19 = vector.load %arg7[%c0_15, %c0_16] : memref<1x128xf32, #tpu.memory_space<vmem>>, vector<1x128xf32>
    %20 = vector.broadcast %19 : vector<1x128xf32> to vector<8x128xf32>
    %21 = arith.addf %18, %20 : vector<8x128xf32>
    %22 = math.tanh %21 : vector<8x128xf32>
    %c0_17 = arith.constant 0 : index
    %c0_18 = arith.constant 0 : index
    %23 = vector.load %arg8[%c0_17, %c0_18] : memref<8x128xf32, #tpu.memory_space<vmem>>, vector<8x128xf32>
    tpu.vector_store %arg8[%c0_17, %c0_18], %22 {strides = array<i32>} : memref<8x128xf32, #tpu.memory_space<vmem>>, vector<8x128xf32>,
    return
  }
  func.func @transform_0(%arg0: i32) -> (i32, i32) {
    %c0_i32 = arith.constant 0 : i32
    %c0_i32_0 = arith.constant 0 : i32
    return %arg0, %c0_i32 : i32, i32
  }
  func.func @transform_1(%arg0: i32) -> (i32, i32) {
    %c0_i32 = arith.constant 0 : i32
    %c0_i32_0 = arith.constant 0 : i32
    %c0_i32_1 = arith.constant 0 : i32
    return %c0_i32, %c0_i32_0 : i32, i32
  }
  func.func @transform_2(%arg0: i32) -> (i32, i32) {
    %c0_i32 = arith.constant 0 : i32
    %c0_i32_0 = arith.constant 0 : i32
    %c0_i32_1 = arith.constant 0 : i32
    return %c0_i32, %c0_i32_0 : i32, i32
  }
  func.func @transform_3(%arg0: i32) -> (i32, i32) {
    %c0_i32 = arith.constant 0 : i32
    %c0_i32_0 = arith.constant 0 : i32
    %c0_i32_1 = arith.constant 0 : i32
    return %c0_i32, %c0_i32_0 : i32, i32
  }
  func.func @transform_4(%arg0: i32) -> (i32, i32) {
    %c0_i32 = arith.constant 0 : i32
    %c0_i32_0 = arith.constant 0 : i32
    %c0_i32_1 = arith.constant 0 : i32
    return %c0_i32, %c0_i32_0 : i32, i32
  }
  func.func @transform_5(%arg0: i32) -> (i32, i32) {
    %c0_i32 = arith.constant 0 : i32
    %c0_i32_0 = arith.constant 0 : i32
    %c0_i32_1 = arith.constant 0 : i32
    return %c0_i32, %c0_i32_0 : i32, i32
  }
  func.func @transform_6(%arg0: i32) -> (i32, i32) {
    %c0_i32 = arith.constant 0 : i32
    %c0_i32_0 = arith.constant 0 : i32
    %c0_i32_1 = arith.constant 0 : i32
    return %c0_i32, %c0_i32_0 : i32, i32
  }
  func.func @transform_7(%arg0: i32) -> (i32, i32) {
    %c0_i32 = arith.constant 0 : i32
    %c0_i32_0 = arith.constant 0 : i32
    return %arg0, %c0_i32 : i32, i32
  }
}

</mosaic_0001>

<llo_original>
// kernel: actor_forward.1
$region0: #{actor_forward.1}
  #allocation0 [shape = 'u32[]', space=smem, size = 0x4, offset = 0x4, fixed_abs, tag = 'smem constant byte address 0x4 - core index']
  #allocation1 [shape = 'u32[144,128]{1,0:T(1,128)}', space=vmem, size = 0x12000, scoped, tag = 'internal scratch']
  %s0 = inlined_call_operand.hbm [shape: f32[2,8], index: 0, kind: input, shape index: {}]
  %s1 = inlined_call_operand.vmem [shape: f32[8,128], index: 1, kind: input, shape index: {}]
  %s2 = inlined_call_operand.vmem [shape: f32[1,128], index: 2, kind: input, shape index: {}]
  %s3 = inlined_call_operand.hbm [shape: bf16[128,128], index: 3, kind: input, shape index: {}]
  %s4 = inlined_call_operand.vmem [shape: f32[1,128], index: 4, kind: input, shape index: {}]
  %s5 = inlined_call_operand.hbm [shape: bf16[128,128], index: 5, kind: input, shape index: {}]
  %s6 = inlined_call_operand.vmem [shape: f32[1,128], index: 6, kind: input, shape index: {}]
  %s7 = inlined_call_operand.vmem [shape: f32[8,128], index: 7, kind: output, shape index: {}]
  %s8 = sld [smem:[#allocation0]]
  $region50: #{actor_forward.1} parent=0
    _
  %s10 = ssub.s32 1, %s8
  %s11 = scalar_select 0, %s10, %s8
  $region1: #{actor_forward.1} parent=0
    #allocation2 [shape = 'u8[4096]{0}', space=vmem, size = 0x1000, scoped, tag = 'input window, operand 0, single buffered']
    #allocation3 [shape = 's32[1]{0}', space=sflag, size = 0x4, scoped, tag = 'scoped memory for actor_forward.1']
    #allocation4 [shape = 'u8[32768]{0}', space=vmem, size = 0x8000, scoped, tag = 'input window, operand 3, single buffered']
    #allocation5 [shape = 's32[1]{0}', space=sflag, size = 0x4, scoped, tag = 'scoped memory for actor_forward.1']
    #allocation6 [shape = 'u8[32768]{0}', space=vmem, size = 0x8000, scoped, tag = 'input window, operand 5, single buffered']
    %12 = vsyncpa [#allocation3], 0
    %13 = vsyncpa [#allocation5], 0
    // Predicated region
    $region2: #{actor_forward.1} parent=1 // pred_check
      _
    $region3: #{actor_forward.1} parent=1 // pred_check_branch
      %15 = sbr.rel (0) target = $region5
    $region4: #{actor_forward.1} parent=1 // pred_region
      %s17 = ssub.s32 128, 32
      %18 = vsyncadd [#allocation3], %s17
      %s19 = sshll.u32 [#allocation2], 4
      %s20 = int_to_ptr.vmem [resolvable:$true] %s19
      %25 = dma.hbm_to_vmem [thread:$0]  %s0, 32, %s20, [#allocation3], 32, 32, 2
    $region5: #{actor_forward.1} parent=1 // pred_fallthru
      _
    // Predicated region
    $region6: #{actor_forward.1} parent=1 // pred_check
      _
    $region7: #{actor_forward.1} parent=1 // pred_check_branch
      %27 = sbr.rel (0) target = $region9
    $region8: #{actor_forward.1} parent=1 // pred_region
      _
    $region9: #{actor_forward.1} parent=1 // pred_fallthru
      _
    // Predicated region
    $region10: #{actor_forward.1} parent=1 // pred_check
      _
    $region11: #{actor_forward.1} parent=1 // pred_check_branch
      %29 = sbr.rel (0) target = $region13
    $region12: #{actor_forward.1} parent=1 // pred_region
      _
    $region13: #{actor_forward.1} parent=1 // pred_fallthru
      _
    // Predicated region
    $region14: #{actor_forward.1} parent=1 // pred_check
      _
    $region15: #{actor_forward.1} parent=1 // pred_check_branch
      %31 = sbr.rel (0) target = $region17
    $region16: #{actor_forward.1} parent=1 // pred_region
      %s33 = ssub.s32 1024, 1024
      %34 = vsyncadd [#allocation5], %s33
      %s35 = sshll.u32 [#allocation4], 4
      %s36 = int_to_ptr.vmem [resolvable:$true] %s35
      %41 = dma.hbm_to_vmem [thread:$0]  %s3, 1024, %s36, [#allocation5], 64, 64, 4
    $region17: #{actor_forward.1} parent=1 // pred_fallthru
      _
    // Predicated region
    $region18: #{actor_forward.1} parent=1 // pred_check
      _
    $region19: #{actor_forward.1} parent=1 // pred_check_branch
      %43 = sbr.rel (0) target = $region21
    $region20: #{actor_forward.1} parent=1 // pred_region
      _
    $region21: #{actor_forward.1} parent=1 // pred_fallthru
      _
    // Predicated region
    $region22: #{actor_forward.1} parent=1 // pred_check
      _
    $region23: #{actor_forward.1} parent=1 // pred_check_branch
      %45 = sbr.rel (0) target = $region25
    $region24: #{actor_forward.1} parent=1 // pred_region
      %s47 = ssub.s32 1024, 1024
      %48 = vsyncadd [#allocation5], %s47
      %s49 = sshll.u32 [#allocation6], 4
      %s50 = int_to_ptr.vmem [resolvable:$true] %s49
      %55 = dma.hbm_to_vmem [thread:$0]  %s5, 1024, %s50, [#allocation5], 64, 64, 4
    $region25: #{actor_forward.1} parent=1 // pred_fallthru
      _
    // Predicated region
    $region26: #{actor_forward.1} parent=1 // pred_check
      _
    $region27: #{actor_forward.1} parent=1 // pred_check_branch
      %57 = sbr.rel (0) target = $region29
    $region28: #{actor_forward.1} parent=1 // pred_region
      _
    $region29: #{actor_forward.1} parent=1 // pred_fallthru
      _
    // Predicated region
    $region30: #{actor_forward.1} parent=1 // pred_check
      _
    $region31: #{actor_forward.1} parent=1 // pred_check_branch
      %59 = sbr.rel (0) target = $region33
    $region32: #{actor_forward.1} parent=1 // pred_region
      %60 = dma.done [#allocation3], 128
    $region33: #{actor_forward.1} parent=1 // pred_fallthru
      _
    // Predicated region
    $region34: #{actor_forward.1} parent=1 // pred_check
      _
    $region35: #{actor_forward.1} parent=1 // pred_check_branch
      %62 = sbr.rel (0) target = $region37
    $region36: #{actor_forward.1} parent=1 // pred_region
      %63 = dma.done [#allocation5], 1024
    $region37: #{actor_forward.1} parent=1 // pred_fallthru
      _
    // Predicated region
    $region38: #{actor_forward.1} parent=1 // pred_check
      _
    $region39: #{actor_forward.1} parent=1 // pred_check_branch
      %65 = sbr.rel (0) target = $region41
    $region40: #{actor_forward.1} parent=1 // pred_region
      %66 = dma.done [#allocation5], 1024
    $region41: #{actor_forward.1} parent=1 // pred_fallthru
      _
    %v68 = vld [vmem:[#allocation2] sm:$0xff]
    %v69 = vld [vmem:[%s1] sm:$0xff]
    %v70 = vld [vmem:[%s2] sm:$0x1]
    %v72 = vlaneseq
    %v73 = vshrl.u32 %v72, 7
    %v74 = vsub.s32 0, %v73
    %v75 = vrot.slane %v70, %v74
    %vm77 = vcmask 64512
    %v79 = vsel %vm77, %v68, 0
    %81 = vmatprep.subr.mxu0 0.0
    %82 = vmatpush1.msra.mxu0 %v69
    %83 = vmatprep.subr.mxu0 0.0
    %84 = vmatpush1.msra.mxu0 0.0
    %85 = vmatprep.subr.mxu0 0.0
    %86 = vmatpush1.msra.mxu0 0.0
    %87 = vmatprep.subr.mxu0 0.0
    %88 = vmatpush1.msra.mxu0 0.0
    %89 = vmatprep.subr.mxu0 0.0
    %90 = vmatpush1.msra.mxu0 0.0
    %91 = vmatprep.subr.mxu0 0.0
    %92 = vmatpush1.msra.mxu0 0.0
    %93 = vmatprep.subr.mxu0 0.0
    %94 = vmatpush1.msra.mxu0 0.0
    %95 = vmatprep.subr.mxu0 0.0
    %96 = vmatpush1.msra.mxu0 0.0
    %97 = vmatprep.subr.mxu0 0.0
    %98 = vmatpush1.msra.mxu0 0.0
    %99 = vmatprep.subr.mxu0 0.0
    %100 = vmatpush1.msra.mxu0 0.0
    %101 = vmatprep.subr.mxu0 0.0
    %102 = vmatpush1.msra.mxu0 0.0
    %103 = vmatprep.subr.mxu0 0.0
    %104 = vmatpush1.msra.mxu0 0.0
    %105 = vmatprep.subr.mxu0 0.0
    %106 = vmatpush1.msra.mxu0 0.0
    %107 = vmatprep.subr.mxu0 0.0
    %108 = vmatpush1.msra.mxu0 0.0
    %109 = vmatprep.subr.mxu0 0.0
    %110 = vmatpush1.msra.mxu0 0.0
    %111 = vmatprep.subr.mxu0 0.0
    %112 = vmatpush1.msra.mxu0 0.0
    %113 = vmatprep.subr.mxu0 0.0
    %114 = vmatpush1.msra.mxu0 0.0
    %115 = vmatprep.subr.mxu0 0.0
    %116 = vmatpush1.msra.mxu0 0.0
    %117 = vmatprep.subr.mxu0 0.0
    %118 = vmatpush1.msra.mxu0 0.0
    %119 = vmatprep.subr.mxu0 0.0
    %120 = vmatpush1.msra.mxu0 0.0
    %121 = vmatprep.subr.mxu0 0.0
    %122 = vmatpush1.msra.mxu0 0.0
    %123 = vmatprep.subr.mxu0 0.0
    %124 = vmatpush1.msra.mxu0 0.0
    %125 = vmatprep.subr.mxu0 0.0
    %126 = vmatpush1.msra.mxu0 0.0
    %127 = vmatprep.subr.mxu0 0.0
    %128 = vmatpush1.msra.mxu0 0.0
    %129 = vmatprep.subr.mxu0 0.0
    %130 = vmatpush1.msra.mxu0 0.0
    %131 = vmatprep.subr.mxu0 0.0
    %132 = vmatpush1.msra.mxu0 0.0
    %133 = vmatprep.subr.mxu0 0.0
    %134 = vmatpush1.msra.mxu0 0.0
    %135 = vmatprep.subr.mxu0 0.0
    %136 = vmatpush1.msra.mxu0 0.0
    %137 = vmatprep.subr.mxu0 0.0
    %138 = vmatpush1.msra.mxu0 0.0
    %139 = vmatprep.subr.mxu0 0.0
    %140 = vmatpush1.msra.mxu0 0.0
    %141 = vmatprep.subr.mxu0 0.0
    %142 = vmatpush1.msra.mxu0 0.0
    %143 = vmatprep.subr.mxu0 0.0
    %144 = vmatpush1.msra.mxu0 0.0
    %145 = vmatprep.mubr.f32.mxu0 0.0
    %146 = vmatmul.mubr.f32.gmra.mrb[0].mxu0 %v79
    %v147 = vpop.f32.mrb[0].mxu0
    %v148 = vadd.f32 %v75, %v147
    %v149 = vpop.f32.mrb[0].mxu0
    %150 = vdwg.mxu0
    %v151 = vmax.f32 %v148, 0.0
    %v152 = vpack.c.bf16 %v151, %v151
    %v153 = vld [vmem:[#allocation4] sm:$0xf]
    %v154 = vld [vmem:[#allocation4 + $0x4] sm:$0xf]
    %v155 = vld [vmem:[#allocation4 + $0x8] sm:$0xf]
    %v156 = vld [vmem:[#allocation4 + $0xc] sm:$0xf]
    %v157 = vld [vmem:[#allocation4 + $0x10] sm:$0xf]
    %v158 = vld [vmem:[#allocation4 + $0x14] sm:$0xf]
    %v159 = vld [vmem:[#allocation4 + $0x18] sm:$0xf]
    %v160 = vld [vmem:[#allocation4 + $0x1c] sm:$0xf]
    %v161 = vld [vmem:[#allocation4 + $0x20] sm:$0xf]
    %v162 = vld [vmem:[#allocation4 + $0x24] sm:$0xf]
    %v163 = vld [vmem:[#allocation4 + $0x28] sm:$0xf]
    %v164 = vld [vmem:[#allocation4 + $0x2c] sm:$0xf]
    %v165 = vld [vmem:[#allocation4 + $0x30] sm:$0xf]
    %v166 = vld [vmem:[#allocation4 + $0x34] sm:$0xf]
    %v167 = vld [vmem:[#allocation4 + $0x38] sm:$0xf]
    %v168 = vld [vmem:[#allocation4 + $0x3c] sm:$0xf]
    %v169 = vld [vmem:[%s4] sm:$0x1]
    %v171 = vlaneseq
    %v172 = vshrl.u32 %v171, 7
    %v173 = vsub.s32 0, %v172
    %v174 = vrot.slane %v169, %v173
    %v192 = vunpack.c.l.b16 %v153
    %v193 = vunpack.c.l.b16 %v154
    %v194 = vunpack.c.l.b16 %v155
    %v195 = vunpack.c.l.b16 %v156
    %v196 = vunpack.c.l.b16 %v157
    %v197 = vunpack.c.l.b16 %v158
    %v198 = vunpack.c.l.b16 %v159
    %v199 = vunpack.c.l.b16 %v160
    %v200 = vunpack.c.l.b16 %v161
    %v201 = vunpack.c.l.b16 %v162
    %v202 = vunpack.c.l.b16 %v163
    %v203 = vunpack.c.l.b16 %v164
    %v204 = vunpack.c.l.b16 %v165
    %v205 = vunpack.c.l.b16 %v166
    %v206 = vunpack.c.l.b16 %v167
    %v207 = vunpack.c.l.b16 %v168
    %v208 = vpack.c.b16 %v193, %v192
    %v209 = vpack.c.b16 %v195, %v194
    %v210 = vpack.c.b16 %v197, %v196
    %v211 = vpack.c.b16 %v199, %v198
    %v212 = vpack.c.b16 %v201, %v200
    %v213 = vpack.c.b16 %v203, %v202
    %v214 = vpack.c.b16 %v205, %v204
    %v215 = vpack.c.b16 %v207, %v206
    %224 = vmatprep.subr.bf16.mxu0 0
    %225 = vmatpush1.bf16.msra.mxu0 %v208
    %226 = vmatprep.subr.bf16.mxu0 0
    %227 = vmatpush1.bf16.msra.mxu0 %v209
    %228 = vmatprep.subr.bf16.mxu0 0
    %229 = vmatpush1.bf16.msra.mxu0 %v210
    %230 = vmatprep.subr.bf16.mxu0 0
    %231 = vmatpush1.bf16.msra.mxu0 %v211
    %232 = vmatprep.subr.bf16.mxu0 0
    %233 = vmatpush1.bf16.msra.mxu0 %v212
    %234 = vmatprep.subr.bf16.mxu0 0
    %235 = vmatpush1.bf16.msra.mxu0 %v213
    %236 = vmatprep.subr.bf16.mxu0 0
    %237 = vmatpush1.bf16.msra.mxu0 %v214
    %238 = vmatprep.subr.bf16.mxu0 0
    %239 = vmatpush1.bf16.msra.mxu0 %v215
    %240 = vmatprep.subr.bf16.mxu0 0
    %241 = vmatpush1.bf16.msra.mxu0 0
    %242 = vmatprep.subr.bf16.mxu0 0
    %243 = vmatpush1.bf16.msra.mxu0 0
    %244 = vmatprep.subr.bf16.mxu0 0
    %245 = vmatpush1.bf16.msra.mxu0 0
    %246 = vmatprep.subr.bf16.mxu0 0
    %247 = vmatpush1.bf16.msra.mxu0 0
    %248 = vmatprep.subr.bf16.mxu0 0
    %249 = vmatpush1.bf16.msra.mxu0 0
    %250 = vmatprep.subr.bf16.mxu0 0
    %251 = vmatpush1.bf16.msra.mxu0 0
    %252 = vmatprep.subr.bf16.mxu0 0
    %253 = vmatpush1.bf16.msra.mxu0 0
    %254 = vmatprep.subr.bf16.mxu0 0
    %255 = vmatpush1.bf16.msra.mxu0 0
    %256 = vmatprep.mubr.bf16.mxu0 0
    %257 = vmatmul.mubr.bf16.gmra.mrb[0].mxu0 %v152
    %v258 = vpop.f32.mrb[0].mxu0
    %v259 = vadd.f32 %v174, %v258
    %v260 = vpop.f32.mrb[0].mxu0
    %v261 = vpop.f32.mrb[0].mxu0
    %v262 = vpop.f32.mrb[0].mxu0
    %263 = vdwg.mxu0
    %v264 = vmax.f32 %v259, 0.0
    %v265 = vpack.c.bf16 %v264, %v264
    %v266 = vld [vmem:[#allocation6] sm:$0xf]
    %v267 = vld [vmem:[#allocation6 + $0x4] sm:$0xf]
    %v268 = vld [vmem:[#allocation6 + $0x8] sm:$0xf]
    %v269 = vld [vmem:[#allocation6 + $0xc] sm:$0xf]
    %v270 = vld [vmem:[#allocation6 + $0x10] sm:$0xf]
    %v271 = vld [vmem:[#allocation6 + $0x14] sm:$0xf]
    %v272 = vld [vmem:[#allocation6 + $0x18] sm:$0xf]
    %v273 = vld [vmem:[#allocation6 + $0x1c] sm:$0xf]
    %v274 = vld [vmem:[#allocation6 + $0x20] sm:$0xf]
    %v275 = vld [vmem:[#allocation6 + $0x24] sm:$0xf]
    %v276 = vld [vmem:[#allocation6 + $0x28] sm:$0xf]
    %v277 = vld [vmem:[#allocation6 + $0x2c] sm:$0xf]
    %v278 = vld [vmem:[#allocation6 + $0x30] sm:$0xf]
    %v279 = vld [vmem:[#allocation6 + $0x34] sm:$0xf]
    %v280 = vld [vmem:[#allocation6 + $0x38] sm:$0xf]
    %v281 = vld [vmem:[#allocation6 + $0x3c] sm:$0xf]
    %v282 = vld [vmem:[%s6] sm:$0x1]
    %v284 = vlaneseq
    %v285 = vshrl.u32 %v284, 7
    %v286 = vsub.s32 0, %v285
    %v287 = vrot.slane %v282, %v286
    %v305 = vunpack.c.l.b16 %v266
    %v306 = vunpack.c.l.b16 %v267
    %v307 = vunpack.c.l.b16 %v268
    %v308 = vunpack.c.l.b16 %v269
    %v309 = vunpack.c.l.b16 %v270
    %v310 = vunpack.c.l.b16 %v271
    %v311 = vunpack.c.l.b16 %v272
    %v312 = vunpack.c.l.b16 %v273
    %v313 = vunpack.c.l.b16 %v274
    %v314 = vunpack.c.l.b16 %v275
    %v315 = vunpack.c.l.b16 %v276
    %v316 = vunpack.c.l.b16 %v277
    %v317 = vunpack.c.l.b16 %v278
    %v318 = vunpack.c.l.b16 %v279
    %v319 = vunpack.c.l.b16 %v280
    %v320 = vunpack.c.l.b16 %v281
    %v321 = vpack.c.b16 %v306, %v305
    %v322 = vpack.c.b16 %v308, %v307
    %v323 = vpack.c.b16 %v310, %v309
    %v324 = vpack.c.b16 %v312, %v311
    %v325 = vpack.c.b16 %v314, %v313
    %v326 = vpack.c.b16 %v316, %v315
    %v327 = vpack.c.b16 %v318, %v317
    %v328 = vpack.c.b16 %v320, %v319
    %337 = vmatprep.subr.bf16.mxu0 0
    %338 = vmatpush1.bf16.msra.mxu0 %v321
    %339 = vmatprep.subr.bf16.mxu0 0
    %340 = vmatpush1.bf16.msra.mxu0 %v322
    %341 = vmatprep.subr.bf16.mxu0 0
    %342 = vmatpush1.bf16.msra.mxu0 %v323
    %343 = vmatprep.subr.bf16.mxu0 0
    %344 = vmatpush1.bf16.msra.mxu0 %v324
    %345 = vmatprep.subr.bf16.mxu0 0
    %346 = vmatpush1.bf16.msra.mxu0 %v325
    %347 = vmatprep.subr.bf16.mxu0 0
    %348 = vmatpush1.bf16.msra.mxu0 %v326
    %349 = vmatprep.subr.bf16.mxu0 0
    %350 = vmatpush1.bf16.msra.mxu0 %v327
    %351 = vmatprep.subr.bf16.mxu0 0
    %352 = vmatpush1.bf16.msra.mxu0 %v328
    %353 = vmatprep.subr.bf16.mxu0 0
    %354 = vmatpush1.bf16.msra.mxu0 0
    %355 = vmatprep.subr.bf16.mxu0 0
    %356 = vmatpush1.bf16.msra.mxu0 0
    %357 = vmatprep.subr.bf16.mxu0 0
    %358 = vmatpush1.bf16.msra.mxu0 0
    %359 = vmatprep.subr.bf16.mxu0 0
    %360 = vmatpush1.bf16.msra.mxu0 0
    %361 = vmatprep.subr.bf16.mxu0 0
    %362 = vmatpush1.bf16.msra.mxu0 0
    %363 = vmatprep.subr.bf16.mxu0 0
    %364 = vmatpush1.bf16.msra.mxu0 0
    %365 = vmatprep.subr.bf16.mxu0 0
    %366 = vmatpush1.bf16.msra.mxu0 0
    %367 = vmatprep.subr.bf16.mxu0 0
    %368 = vmatpush1.bf16.msra.mxu0 0
    %369 = vmatprep.mubr.bf16.mxu0 0
    %370 = vmatmul.mubr.bf16.gmra.mrb[0].mxu0 %v265
    %v371 = vpop.f32.mrb[0].mxu0
    %v372 = vadd.f32 %v287, %v371
    %v373 = vpop.f32.mrb[0].mxu0
    %v374 = vpop.f32.mrb[0].mxu0
    %v375 = vpop.f32.mrb[0].mxu0
    %376 = vdwg.mxu0
    %v377 = vtanh.pop %v372
    %378 = vst [vmem:[%s7] sm:$0xff] %v377
    // Predicated region
    $region42: #{actor_forward.1} parent=1 // pred_check
      _
    $region43: #{actor_forward.1} parent=1 // pred_check_branch
      %380 = sbr.rel (0) target = $region45
    $region44: #{actor_forward.1} parent=1 // pred_region
      _
    $region45: #{actor_forward.1} parent=1 // pred_fallthru
      _
    // Predicated region
    $region46: #{actor_forward.1} parent=1 // pred_check
      _
    $region47: #{actor_forward.1} parent=1 // pred_check_branch
      %382 = sbr.rel (0) target = $region49
    $region48: #{actor_forward.1} parent=1 // pred_region
      _
    $region49: #{actor_forward.1} parent=1 // pred_fallthru
      _
    %383 = vsyncpa [#allocation3], 1
    %384 = vsyncpa [#allocation5], 1

</llo_original>
